<compile_context>
chip_gen: v6e
topology: v6e:2x2x1
jax: 0.10.0
libtpu: 0.0.40
codegen_flags: <defaults>
</compile_context>

<pallas_src>
import jax
import jax.numpy as jnp
from jax.experimental import pallas as pl
from jax.experimental.pallas import tpu as pltpu


def _round_up(n, m):
    return ((n + m - 1) // m) * m


def bp_mlp_kernel(xT_ref, w1_ref, b1_ref, w2_ref, b2_ref, o_ref):
    # xT_ref: (13, TB)  batch on lanes
    # w1_ref: (30, 13)  resident weights (PyTorch layout)
    # b1_ref: (30, 1)   bias column
    # w2_ref: (30, 1)   second-layer weights as a column
    # b2_ref: (1,)      scalar bias in SMEM
    # o_ref : (1, TB)   lane-dense output
    xT = xT_ref[...]
    w1 = w1_ref[...]

    # Layer 1 on the MXU: bf16 operands, f32 accumulate; bias + ReLU in f32.
    h = jnp.dot(w1.astype(jnp.bfloat16), xT.astype(jnp.bfloat16),
                preferred_element_type=jnp.float32)          # (30, TB)
    h = jnp.maximum(h + b1_ref[...], 0.0)                    # ReLU, f32

    # Layer 2 (30 -> 1) on the VPU: broadcast FMA + sublane reduce (XLU).
    y = jnp.sum(h * w2_ref[...], axis=0, keepdims=True)      # (1, TB)
    y = jnp.maximum(y + b2_ref[0], 0.0)                      # ReLU, f32

    o_ref[...] = y.astype(o_ref.dtype)


def bp_model_forward(x, w1, b1, w2, b2, *, tb=2048):
    """Forward pass of BPModel.

    x : (B, 13) f32
    w1: (30, 13), b1: (30,)   -- PyTorch nn.Linear(13, 30) layout
    w2: (1, 30),  b2: (1,)    -- PyTorch nn.Linear(30, 1) layout
    returns (B, 1) f32
    """
    assert tb % 128 == 0, "batch tile must be a multiple of 128 lanes"
    B, F = x.shape
    H = w1.shape[0]

    # Pick a lane-dense batch tile; pad batch to a multiple of the tile.
    if B <= tb:
        TB = max(128, _round_up(B, 128))
        B_pad = TB
    else:
        TB = tb
        B_pad = _round_up(B, TB)

    # Transposed, lane-dense layout; zero-padded batch columns are sliced off.
    xT = jnp.pad(x.T, ((0, 0), (0, B_pad - B)))   # (13, B_pad)
    b1_col = b1.reshape(H, 1).astype(jnp.float32)  # (30, 1)
    w2_col = w2.reshape(H, 1).astype(jnp.float32)  # (30, 1)
    b2_s = b2.reshape(1).astype(jnp.float32)       # (1,) -> SMEM scalar

    grid = (B_pad // TB,)
    yT = pl.pallas_call(
        bp_mlp_kernel,
        out_shape=jax.ShapeDtypeStruct((1, B_pad), jnp.float32),
        grid=grid,
        in_specs=[
            pl.BlockSpec((F, TB), lambda i: (0, i)),        # x tile, pipelined
            pl.BlockSpec((H, F), lambda i: (0, 0)),         # w1 resident
            pl.BlockSpec((H, 1), lambda i: (0, 0)),         # b1 resident
            pl.BlockSpec((H, 1), lambda i: (0, 0)),         # w2 resident
            pl.BlockSpec(memory_space=pltpu.MemorySpace.SMEM),  # b2 scalar
        ],
        out_specs=pl.BlockSpec((1, TB), lambda i: (0, i)),  # lane-dense output
        compiler_params=pltpu.CompilerParams(
            dimension_semantics=("parallel",)),
    )(xT, w1.astype(jnp.float32), b1_col, w2_col, b2_s)

    return yT[0, :B].reshape(B, 1)


def init_params(key):
    """Deterministic params matching nn.Linear(13,30) & nn.Linear(30,1) (PyTorch layout)."""
    k1, k2, k3, k4 = jax.random.split(key, 4)
    bound1 = 1.0 / jnp.sqrt(13.0)
    bound2 = 1.0 / jnp.sqrt(30.0)
    w1 = jax.random.uniform(k1, (30, 13), jnp.float32, -bound1, bound1)
    b1 = jax.random.uniform(k2, (30,), jnp.float32, -bound1, bound1)
    w2 = jax.random.uniform(k3, (1, 30), jnp.float32, -bound2, bound2)
    b2 = jax.random.uniform(k4, (1,), jnp.float32, -bound2, bound2)
    return w1, b1, w2, b2


def reference_forward(x, w1, b1, w2, b2):
    h = jnp.maximum(x @ w1.T + b1, 0.0)
    return jnp.maximum(h @ w2.T + b2, 0.0)


if __name__ == "__main__":
    key = jax.random.PRNGKey(0)
    kx, kp, kx2 = jax.random.split(key, 3)
    w1, b1, w2, b2 = init_params(kp)

    # Small main check (batch=8, padded to one 128-lane tile).
    batch = 8
    x = jax.random.normal(kx, (batch, 13), jnp.float32)
    out = jax.block_until_ready(bp_model_forward(x, w1, b1, w2, b2))
    ref = reference_forward(x, w1, b1, w2, b2)
    assert out.shape == (batch, 1), out.shape
    # Layer-1 operands are bf16 (f32 accumulate) -> loosened tolerance.
    assert jnp.allclose(out, ref, atol=2e-2, rtol=2e-2), (out, ref)

    # Secondary check exercising the multi-tile (grid > 1) + tail-padding path.
    batch2 = 200
    x2 = jax.random.normal(kx2, (batch2, 13), jnp.float32)
    out2 = jax.block_until_ready(bp_model_forward(x2, w1, b1, w2, b2, tb=128))
    ref2 = reference_forward(x2, w1, b1, w2, b2)
    assert out2.shape == (batch2, 1), out2.shape
    assert jnp.allclose(out2, ref2, atol=2e-2, rtol=2e-2), (out2, ref2)

    print("KERNEL_OK")
</pallas_src>

<mosaic_0001>
module attributes {stable_mosaic.version = 11 : i64} {
  func.func @bp_mlp_kernel(%arg0: i32, %arg1: memref<13x128xf32, #tpu.memory_space<vmem>>, %arg2: memref<30x13xf32, #tpu.memory_space<vmem>>, %arg3: memref<30x1xf32, #tpu.memory_space<vmem>>, %arg4: memref<30x1xf32, #tpu.memory_space<vmem>>, %arg5: memref<1xf32, #tpu.memory_space<smem>>, %arg6: memref<1x128xf32, #tpu.memory_space<vmem>>) attributes {dimension_semantics = [#tpu.dimension_semantics<parallel>], iteration_bounds = array<i64: 1>, scalar_prefetch = 0 : i64, scratch_operands = 0 : i64, tpu.core_type = #tpu.core_type<tc>, window_params = [{transform_indices = @transform_0, window_bounds = array<i64: 13, 128>}, {pipeline_mode = #tpu.pipeline_mode<synchronous>, transform_indices = @transform_1, window_bounds = array<i64: 30, 13>}, {pipeline_mode = #tpu.pipeline_mode<synchronous>, transform_indices = @transform_2, window_bounds = array<i64: 30, 1>}, {pipeline_mode = #tpu.pipeline_mode<synchronous>, transform_indices = @transform_3, window_bounds = array<i64: 30, 1>}, {transform_indices = @transform_4, window_bounds = array<i64: 1>}, {transform_indices = @transform_5, window_bounds = array<i64: 1, 128>}]} {
    %c0 = arith.constant 0 : index
    %c0_0 = arith.constant 0 : index
    %0 = vector.load %arg1[%c0, %c0_0] : memref<13x128xf32, #tpu.memory_space<vmem>>, vector<13x128xf32>
    %c0_1 = arith.constant 0 : index
    %c0_2 = arith.constant 0 : index
    %1 = vector.load %arg2[%c0_1, %c0_2] : memref<30x13xf32, #tpu.memory_space<vmem>>, vector<30x13xf32>
    %2 = arith.truncf %1 : vector<30x13xf32> to vector<30x13xbf16>
    %3 = arith.truncf %0 : vector<13x128xf32> to vector<13x128xbf16>
    %cst = arith.constant dense<0.000000e+00> : vector<30x128xf32>
    %4 = tpu.matmul %2, %3, %cst {dimension_numbers = #tpu.dot_dimension_numbers<[1], [0], [0], [1], [0, 0, 1, 1], [], []>} : vector<30x13xbf16>, vector<13x128xbf16>, vector<30x128xf32> -> vector<30x128xf32>
    %c0_3 = arith.constant 0 : index
    %c0_4 = arith.constant 0 : index
    %5 = vector.load %arg3[%c0_3, %c0_4] : memref<30x1xf32, #tpu.memory_space<vmem>>, vector<30x1xf32>
    %6 = vector.broadcast %5 : vector<30x1xf32> to vector<30x128xf32>
    %7 = arith.addf %4, %6 : vector<30x128xf32>
    %cst_5 = arith.constant 0.000000e+00 : f32
    %8 = vector.broadcast %cst_5 : f32 to vector<30x128xf32>
    %9 = arith.maximumf %7, %8 : vector<30x128xf32>
    %c0_6 = arith.constant 0 : index
    %c0_7 = arith.constant 0 : index
    %10 = vector.load %arg4[%c0_6, %c0_7] : memref<30x1xf32, #tpu.memory_space<vmem>>, vector<30x1xf32>
    %11 = vector.broadcast %10 : vector<30x1xf32> to vector<30x128xf32>
    %12 = arith.mulf %9, %11 : vector<30x128xf32>
    %cst_8 = arith.constant dense<0.000000e+00> : vector<128xf32>
    %13 = vector.multi_reduction <add>, %12, %cst_8 [0] : vector<30x128xf32> to vector<128xf32>
    %14 = vector.shape_cast %13 : vector<128xf32> to vector<1x128xf32>
    %c0_9 = arith.constant 0 : index
    %15 = memref.load %arg5[%c0_9] : memref<1xf32, #tpu.memory_space<smem>>
    %16 = vector.broadcast %15 : f32 to vector<1x128xf32>
    %17 = arith.addf %14, %16 : vector<1x128xf32>
    %cst_10 = arith.constant 0.000000e+00 : f32
    %18 = vector.broadcast %cst_10 : f32 to vector<1x128xf32>
    %19 = arith.maximumf %17, %18 : vector<1x128xf32>
    %c0_11 = arith.constant 0 : index
    %c0_12 = arith.constant 0 : index
    %20 = vector.load %arg6[%c0_11, %c0_12] : memref<1x128xf32, #tpu.memory_space<vmem>>, vector<1x128xf32>
    tpu.vector_store %arg6[%c0_11, %c0_12], %19 {strides = array<i32>} : memref<1x128xf32, #tpu.memory_space<vmem>>, vector<1x128xf32>,
    return
  }
  func.func @transform_0(%arg0: i32) -> (i32, i32) {
    %c0_i32 = arith.constant 0 : i32
    %c0_i32_0 = arith.constant 0 : i32
    return %c0_i32, %arg0 : i32, i32
  }
  func.func @transform_1(%arg0: i32) -> (i32, i32) {
    %c0_i32 = arith.constant 0 : i32
    %c0_i32_0 = arith.constant 0 : i32
    %c0_i32_1 = arith.constant 0 : i32
    return %c0_i32, %c0_i32_0 : i32, i32
  }
  func.func @transform_2(%arg0: i32) -> (i32, i32) {
    %c0_i32 = arith.constant 0 : i32
    %c0_i32_0 = arith.constant 0 : i32
    %c0_i32_1 = arith.constant 0 : i32
    return %c0_i32, %c0_i32_0 : i32, i32
  }
  func.func @transform_3(%arg0: i32) -> (i32, i32) {
    %c0_i32 = arith.constant 0 : i32
    %c0_i32_0 = arith.constant 0 : i32
    %c0_i32_1 = arith.constant 0 : i32
    return %c0_i32, %c0_i32_0 : i32, i32
  }
  func.func @transform_4(%arg0: i32) -> i32 {
    %c0_i32 = arith.constant 0 : i32
    %c0_i32_0 = arith.constant 0 : i32
    return %c0_i32 : i32
  }
  func.func @transform_5(%arg0: i32) -> (i32, i32) {
    %c0_i32 = arith.constant 0 : i32
    %c0_i32_0 = arith.constant 0 : i32
    return %c0_i32, %arg0 : i32, i32
  }
}

</mosaic_0001>

<llo_original>
// kernel: tpu_custom_call.1
$region0: #{tpu_custom_call.1}
  #allocation0 [shape = 'u32[]', space=smem, size = 0x4, offset = 0x4, fixed_abs, tag = 'smem constant byte address 0x4 - core index']
  #allocation1 [shape = 'u32[144,128]{1,0:T(1,128)}', space=vmem, size = 0x12000, scoped, tag = 'internal scratch']
  #allocation2 [shape = 'f32[1]{0:T(128)S(6)}', space=smem, size = 0x200, scoped, tag = 'scoped memory for tpu_custom_call.1']
  %s0 = inlined_call_operand.vmem [shape: f32[13,128], index: 0, kind: input, shape index: {}]
  %s1 = inlined_call_operand.vmem [shape: f32[30,13], index: 1, kind: input, shape index: {}]
  %s2 = inlined_call_operand.vmem [shape: f32[30,1], index: 2, kind: input, shape index: {}]
  %s3 = inlined_call_operand.vmem [shape: f32[30,1], index: 3, kind: input, shape index: {}]
  %s4 = inlined_call_operand.<no memory space> [shape: f32[1], index: 4, kind: input, shape index: {}]
  %s5 = inlined_call_operand.hbm [shape: f32[1,128], index: 5, kind: output, shape index: {}]
  %s6 = sld [smem:[#allocation0]]
  $region30: #{tpu_custom_call.1} parent=0
    _
  %s8 = ssub.s32 1, %s6
  %s9 = scalar_select 0, %s8, %s6
  %10 = sst [smem:[#allocation2]] %s4
  $region1: #{tpu_custom_call.1} parent=0
    #allocation3 [shape = 'u8[512]{0}', space=vmem, size = 0x400, scoped, tag = 'output window, operand 0, single buffered']
    #allocation4 [shape = 's32[1]{0}', space=sflag, size = 0x4, scoped, tag = 'scoped memory for tpu_custom_call.1']
    %11 = vsyncpa [#allocation4], 0
    // Predicated region
    $region2: #{tpu_custom_call.1} parent=1 // pred_check
      _
    $region3: #{tpu_custom_call.1} parent=1 // pred_check_branch
      %13 = sbr.rel (0) target = $region5
    $region4: #{tpu_custom_call.1} parent=1 // pred_region
      _
    $region5: #{tpu_custom_call.1} parent=1 // pred_fallthru
      _
    // Predicated region
    $region6: #{tpu_custom_call.1} parent=1 // pred_check
      _
    $region7: #{tpu_custom_call.1} parent=1 // pred_check_branch
      %15 = sbr.rel (0) target = $region9
    $region8: #{tpu_custom_call.1} parent=1 // pred_region
      _
    $region9: #{tpu_custom_call.1} parent=1 // pred_fallthru
      _
    // Predicated region
    $region10: #{tpu_custom_call.1} parent=1 // pred_check
      _
    $region11: #{tpu_custom_call.1} parent=1 // pred_check_branch
      %17 = sbr.rel (0) target = $region13
    $region12: #{tpu_custom_call.1} parent=1 // pred_region
      _
    $region13: #{tpu_custom_call.1} parent=1 // pred_fallthru
      _
    // Predicated region
    $region14: #{tpu_custom_call.1} parent=1 // pred_check
      _
    $region15: #{tpu_custom_call.1} parent=1 // pred_check_branch
      %19 = sbr.rel (0) target = $region17
    $region16: #{tpu_custom_call.1} parent=1 // pred_region
      _
    $region17: #{tpu_custom_call.1} parent=1 // pred_fallthru
      _
    // Predicated region
    $region18: #{tpu_custom_call.1} parent=1 // pred_check
      _
    $region19: #{tpu_custom_call.1} parent=1 // pred_check_branch
      %21 = sbr.rel (0) target = $region21
    $region20: #{tpu_custom_call.1} parent=1 // pred_region
      _
    $region21: #{tpu_custom_call.1} parent=1 // pred_fallthru
      _
    %v23 = vld [vmem:[%s0] sm:$0xff]
    %v24 = vld [vmem:[%s0 + $0x8] sm:$0x1f]
    %v25 = vld [vmem:[%s1] sm:$0xff]
    %v26 = vld [vmem:[%s1 + $0x8] sm:$0xff]
    %v27 = vld [vmem:[%s1 + $0x10] sm:$0xff]
    %v28 = vld [vmem:[%s1 + $0x18] sm:$0x3f]
    %v29 = vpack.c.bf16 %v26, %v25
    %v30 = vpack.c.bf16 %v28, %v27
    %v31 = vpack.c.bf16 %v24, %v23
    %v32 = vld [vmem:[%s2] sm:$0xff]
    %v33 = vld [vmem:[%s2 + $0x8] sm:$0xff]
    %v34 = vld [vmem:[%s2 + $0x10] sm:$0xff]
    %v35 = vld [vmem:[%s2 + $0x18] sm:$0x3f]
    %37 = vset.pattern.permute.xlu0 0
    %38 = vperm.xlu0 %37, %v32
    %v39 = vpop.permute.xlu0 %38
    %42 = vset.pattern.permute.xlu0 0
    %43 = vperm.xlu0 %42, %v33
    %v44 = vpop.permute.xlu0 %43
    %47 = vset.pattern.permute.xlu0 0
    %48 = vperm.xlu0 %47, %v34
    %v49 = vpop.permute.xlu0 %48
    %52 = vset.pattern.permute.xlu0 0
    %53 = vperm.xlu0 %52, %v35
    %v54 = vpop.permute.xlu0 %53
    %vm56 = vcmask 105472
    %v58 = vsel %vm56, %v29, 0
    %v61 = vsel %vm56, %v30, 0
    %vm63 = vcmask 1045504
    %vm64 = vcmask 1046528
    %v65 = vsel %vm63, 4294967295, 65535
    %v66 = vsel %vm64, %v65, 0
    %v68 = vand.u32 %v31, %v66
    %70 = vmatprep.subr.bf16.mxu0 0
    %71 = vmatpush1.bf16.msra.mxu0 0
    %72 = vmatprep.subr.bf16.mxu0 0
    %73 = vmatpush1.bf16.msra.mxu0 0
    %74 = vmatprep.subr.bf16.mxu0 0
    %75 = vmatpush1.bf16.msra.mxu0 0
    %76 = vmatprep.subr.bf16.mxu0 0
    %77 = vmatpush1.bf16.msra.mxu0 0
    %78 = vmatprep.subr.bf16.mxu0 0
    %79 = vmatpush1.bf16.msra.mxu0 0
    %80 = vmatprep.subr.bf16.mxu0 0
    %81 = vmatpush1.bf16.msra.mxu0 0
    %82 = vmatprep.subr.bf16.mxu0 0
    %83 = vmatpush1.bf16.msra.mxu0 0
    %84 = vmatprep.subr.bf16.mxu0 0
    %85 = vmatpush1.bf16.msra.mxu0 %v68
    %86 = vmatprep.subr.bf16.mxu0 0
    %87 = vmatpush2.bf16.msra.mxu0 0
    %88 = vmatprep.subr.bf16.mxu0 0
    %89 = vmatpush2.bf16.msra.mxu0 0
    %90 = vmatprep.subr.bf16.mxu0 0
    %91 = vmatpush2.bf16.msra.mxu0 0
    %92 = vmatprep.subr.bf16.mxu0 0
    %93 = vmatpush2.bf16.msra.mxu0 0
    %94 = vmatprep.subr.bf16.mxu0 0
    %95 = vmatpush2.bf16.msra.mxu0 0
    %96 = vmatprep.subr.bf16.mxu0 0
    %97 = vmatpush2.bf16.msra.mxu0 0
    %98 = vmatprep.subr.bf16.mxu0 0
    %99 = vmatpush2.bf16.msra.mxu0 0
    %100 = vmatprep.subr.bf16.mxu0 0
    %101 = vmatpush2.bf16.msra.mxu0 0
    %102 = vmatprep.mubr.bf16.mxu0 0
    %103 = vmatmul.mubr.bf16.gmra.mxu0 %v58
    %v104 = vpop.f32.mrf.mxu0
    %v105 = vadd.f32 %v39, %v104
    %v106 = vpop.f32.mrf.mxu0
    %v107 = vpop.f32.mrf.mxu0
    %v108 = vadd.f32 %v44, %v107
    %v109 = vpop.f32.mrf.mxu0
    %110 = vmatprep.mubr.bf16.mxu0 0
    %111 = vmatmul.mubr.bf16.gmra.mxu0 %v61
    %v112 = vpop.f32.mrf.mxu0
    %v113 = vadd.f32 %v49, %v112
    %v114 = vpop.f32.mrf.mxu0
    %v115 = vpop.f32.mrf.mxu0
    %v116 = vadd.f32 %v54, %v115
    %v117 = vpop.f32.mrf.mxu0
    %118 = vdwg.mxu0
    %v119 = vmax.f32 %v105, 0.0
    %v120 = vmax.f32 %v108, 0.0
    %v121 = vmax.f32 %v113, 0.0
    %v122 = vmax.f32 %v116, 0.0
    %v123 = vld [vmem:[%s3] sm:$0xff]
    %v124 = vld [vmem:[%s3 + $0x8] sm:$0xff]
    %v125 = vld [vmem:[%s3 + $0x10] sm:$0xff]
    %v126 = vld [vmem:[%s3 + $0x18] sm:$0x3f]
    %128 = vset.pattern.permute.xlu0 0
    %129 = vperm.xlu0 %128, %v123
    %v130 = vpop.permute.xlu0 %129
    %133 = vset.pattern.permute.xlu0 0
    %134 = vperm.xlu0 %133, %v124
    %v135 = vpop.permute.xlu0 %134
    %138 = vset.pattern.permute.xlu0 0
    %139 = vperm.xlu0 %138, %v125
    %v140 = vpop.permute.xlu0 %139
    %143 = vset.pattern.permute.xlu0 0
    %144 = vperm.xlu0 %143, %v126
    %v145 = vpop.permute.xlu0 %144
    %v147 = vmul.f32 %v119, %v130
    %v148 = vmul.f32 %v120, %v135
    %v149 = vmul.f32 %v121, %v140
    %v150 = vmul.f32 %v122, %v145
    %v151 = vadd.f32 %v147, %v148
    %v152 = vadd.f32 %v151, %v149
    %v153 = vsel %vm63, %v150, 0.0
    %v154 = vadd.f32 %v152, %v153
    %v155 = vrot.slane %v154, 4
    %v156 = vadd.f32 %v154, %v155
    %v157 = vrot.slane %v156, 2
    %v158 = vadd.f32 %v156, %v157
    %v159 = vrot.slane %v158, 1
    %v160 = vadd.f32 %v158, %v159
    %s161 = sld [smem:[#allocation2]]
    %v162 = vstv %s161
    %v163 = vadd.f32 %v160, %v162
    %v164 = vmax.f32 %v163, 0.0
    %165 = vst [vmem:[#allocation3] sm:$0x1] %v164
    // Predicated region
    $region22: #{tpu_custom_call.1} parent=1 // pred_check
      _
    $region23: #{tpu_custom_call.1} parent=1 // pred_check_branch
      %167 = sbr.rel (0) target = $region25
    $region24: #{tpu_custom_call.1} parent=1 // pred_region
      %s169 = ssub.s32 16, 16
      %170 = vsyncadd [#allocation4], %s169
      %s172 = sshll.u32 [#allocation3], 4
      %s173 = int_to_ptr.vmem [resolvable:$true] %s172
      %175 = dma.vmem_to_hbm [thread:$0]  %s173, 16, %s5, [#allocation4]
    $region25: #{tpu_custom_call.1} parent=1 // pred_fallthru
      _
    // Predicated region
    $region26: #{tpu_custom_call.1} parent=1 // pred_check
      _
    $region27: #{tpu_custom_call.1} parent=1 // pred_check_branch
      %177 = sbr.rel (0) target = $region29
    $region28: #{tpu_custom_call.1} parent=1 // pred_region
      %178 = dma.done [#allocation4], 16
    $region29: #{tpu_custom_call.1} parent=1 // pred_fallthru
      _
    %179 = vsyncpa [#allocation4], 1

</llo_original>
